<compile_context>
chip_gen: v6e
topology: v6e:2x2x1
jax: 0.10.0
libtpu: 0.0.40
codegen_flags: <defaults>
</compile_context>

<pallas_src>
import functools

import jax
import jax.numpy as jnp
from jax.experimental import pallas as pl
from jax.experimental.pallas import tpu as pltpu

KSIZE = 3  # 3x3 conv, padding=1 ("same")


def _stylenet_conv_kernel(x_ref, w_ref, b_ref, m_ref, o_ref, *, W, CP, L):
    """One chunk of BB images, packed along the lane axis.

    x_ref : (CP, L)      L = BB*H*W pixels on lanes, CP padded channels on sublanes
    w_ref : (CP, 9*CP)   fused conv weights (rows = C_out, cols = tap-major / ci-minor)
    b_ref : (CP, 1)      bias (f32)
    m_ref : (9, L)       per-tap 0/1 border masks ("SAME" zero padding)
    o_ref : (CP, L)      output
    """
    x = x_ref[...]

    windows = []
    for kh in range(KSIZE):
        for kw in range(KSIZE):
            dh, dw = kh - 1, kw - 1
            off = dh * W + dw
            t = kh * KSIZE + kw
            # window[p] = x[p + off] (circular roll on the XLU; every lane that
            # wraps across an image/row boundary is zeroed by the mask below).
            rolled = x if off == 0 else pltpu.roll(x, shift=(-off) % L, axis=1)
            if dh == 0 and dw == 0:
                win = rolled                        # center tap: no mask needed
            else:
                win = rolled * m_ref[t:t + 1, :]    # single multiply per tap
            windows.append(win)

    # im2col patch assembled in registers (no scratch round-trip): (9*CP, L).
    patch = jnp.concatenate(windows, axis=0)

    # One fused MXU matmul with f32 accumulation; bias added once after the dot.
    acc = jnp.dot(w_ref[...], patch, preferred_element_type=jnp.float32)
    acc = acc + b_ref[...]

    # Full-sublane, lane-dense unmasked store.
    o_ref[...] = acc.astype(o_ref.dtype)


def _pick_images_per_step(B, CP, HW, item_bytes):
    """Largest divisor of B whose per-step working set fits a conservative VMEM budget."""
    budget = 8 * 1024 * 1024  # ample headroom even on v7x (64 MiB VMEM, 32 MiB scoped)
    per_image = (2 + 9) * CP * HW * item_bytes + 2 * CP * HW * 4
    bb_max = max(1, budget // per_image)
    bb = 1
    for cand in range(1, B + 1):
        if B % cand == 0 and cand <= bb_max:
            bb = cand
    # Lane-dim blocks must be a multiple of 128 unless they span the full array.
    if (bb * HW) % 128 != 0:
        bb = B
    return bb


@functools.partial(jax.jit, static_argnames=("compute_dtype",))
def screen_shooting(embed_image, weights, bias, compute_dtype=None):
    """ScreenShooting.forward: noised_image = stylenet(embed_image).

    embed_image : (B, C, H, W)  NCHW, matching the PyTorch convention
    weights     : (3, 3, C, C)  [kh, kw, c_in, c_out]
    bias        : (C,)
    compute_dtype: dtype for the patch/weights (e.g. jnp.bfloat16 on v6e/v7x);
                   defaults to the input dtype.  Accumulation is always f32.
    returns     : (B, C, H, W)
    """
    B, C, H, W = embed_image.shape
    HW = H * W
    CP = ((C + 7) // 8) * 8  # channels rounded up to a full sublane tile
    cdt = jnp.dtype(embed_image.dtype if compute_dtype is None else compute_dtype)

    BB = _pick_images_per_step(B, CP, HW, cdt.itemsize)
    L = BB * HW
    nsteps = B // BB

    # Pack images along the lane axis: (B, C, H, W) -> (CP, B*HW).
    x = embed_image.reshape(B, C, HW)
    x = jnp.swapaxes(x, 0, 1)                                    # (C, B, HW)
    x = jnp.pad(x, ((0, CP - C), (0, 0), (0, 0)))                # (CP, B, HW)
    x = x.reshape(CP, B * HW).astype(cdt)

    # Fused weights: column (kh*3+kw)*CP + ci, row co (both channel axes padded to CP).
    w_flat = weights.reshape(KSIZE * KSIZE, C, C)
    w_pad = jnp.zeros((KSIZE * KSIZE, CP, CP), cdt).at[:, :C, :C].set(
        w_flat.astype(cdt))
    w_fused_t = w_pad.reshape(KSIZE * KSIZE * CP, CP).T          # (CP, 9*CP)

    b_pad = jnp.zeros((CP, 1), jnp.float32).at[:C, 0].set(bias.astype(jnp.float32))

    # Per-tap border masks, built once (constant-folded under jit), tiled per image.
    hh = jnp.repeat(jnp.arange(H, dtype=jnp.int32), W)
    ww = jnp.tile(jnp.arange(W, dtype=jnp.int32), H)
    rows = []
    for kh in range(KSIZE):
        for kw in range(KSIZE):
            dh, dw = kh - 1, kw - 1
            m = jnp.ones((HW,), jnp.float32)
            if dh == -1:
                m = m * (hh >= 1)
            elif dh == 1:
                m = m * (hh <= H - 2)
            if dw == -1:
                m = m * (ww >= 1)
            elif dw == 1:
                m = m * (ww <= W - 2)
            rows.append(m)
    mask9 = jnp.tile(jnp.stack(rows, axis=0), (1, BB)).astype(cdt)  # (9, L)

    kernel = functools.partial(_stylenet_conv_kernel, W=W, CP=CP, L=L)

    out = pl.pallas_call(
        kernel,
        out_shape=jax.ShapeDtypeStruct((CP, B * HW), embed_image.dtype),
        grid=(nsteps,),
        in_specs=[
            pl.BlockSpec((CP, L), lambda i: (0, i)),                    # image chunk
            pl.BlockSpec((CP, KSIZE * KSIZE * CP), lambda i: (0, 0)),   # fused weights
            pl.BlockSpec((CP, 1), lambda i: (0, 0)),                    # bias
            pl.BlockSpec((KSIZE * KSIZE, L), lambda i: (0, 0)),         # border masks
        ],
        out_specs=pl.BlockSpec((CP, L), lambda i: (0, i)),
        compiler_params=pltpu.CompilerParams(
            dimension_semantics=("parallel",),
        ),
    )(x, w_fused_t, b_pad, mask9)

    # (CP, B*HW) -> (B, C, H, W); drop the padded channel rows.
    out = out.reshape(CP, B, HW)[:C]
    out = jnp.swapaxes(out, 0, 1).reshape(B, C, H, W)
    return out


def _reference(embed_image, weights, bias):
    """Pure-JAX reference for the synthetic stylenet (3x3 conv, padding=1)."""
    out = jax.lax.conv_general_dilated(
        embed_image.astype(jnp.float32),
        weights.astype(jnp.float32),          # (3,3,Cin,Cout) == HWIO
        window_strides=(1, 1),
        padding="SAME",
        dimension_numbers=("NCHW", "HWIO", "NCHW"),
    ) + bias.astype(jnp.float32)[None, :, None, None]
    return out.astype(embed_image.dtype)


if __name__ == "__main__":
    B, C, H, W = 2, 4, 16, 16

    key = jax.random.PRNGKey(0)
    k_img, k_w, k_b = jax.random.split(key, 3)

    embed_image = jax.random.normal(k_img, (B, C, H, W), dtype=jnp.float32)
    weights = (jax.random.normal(k_w, (KSIZE, KSIZE, C, C), dtype=jnp.float32)
               * 0.1)
    bias = jax.random.normal(k_b, (C,), dtype=jnp.float32) * 0.1

    noised = jax.block_until_ready(screen_shooting(embed_image, weights, bias))

    ref = _reference(embed_image, weights, bias)
    assert noised.shape == (B, C, H, W)
    err = float(jnp.max(jnp.abs(noised - ref)))
    assert jnp.allclose(noised, ref, atol=1e-4, rtol=1e-4), err

    print("KERNEL_OK")
</pallas_src>

<mosaic_0001>
module attributes {stable_mosaic.version = 11 : i64} {
  func.func @_stylenet_conv_kernel(%arg0: i32, %arg1: memref<8x512xf32, #tpu.memory_space<vmem>>, %arg2: memref<8x72xf32, #tpu.memory_space<vmem>>, %arg3: memref<8x1xf32, #tpu.memory_space<vmem>>, %arg4: memref<9x512xf32, #tpu.memory_space<vmem>>, %arg5: memref<8x512xf32, #tpu.memory_space<vmem>>) attributes {dimension_semantics = [#tpu.dimension_semantics<parallel>], iteration_bounds = array<i64: 1>, scalar_prefetch = 0 : i64, scratch_operands = 0 : i64, tpu.core_type = #tpu.core_type<tc>, window_params = [{transform_indices = @transform_0, window_bounds = array<i64: 8, 512>}, {pipeline_mode = #tpu.pipeline_mode<synchronous>, transform_indices = @transform_1, window_bounds = array<i64: 8, 72>}, {pipeline_mode = #tpu.pipeline_mode<synchronous>, transform_indices = @transform_2, window_bounds = array<i64: 8, 1>}, {pipeline_mode = #tpu.pipeline_mode<synchronous>, transform_indices = @transform_3, window_bounds = array<i64: 9, 512>}, {transform_indices = @transform_4, window_bounds = array<i64: 8, 512>}]} {
    %c0 = arith.constant 0 : index
    %c0_0 = arith.constant 0 : index
    %0 = vector.load %arg1[%c0, %c0_0] : memref<8x512xf32, #tpu.memory_space<vmem>>, vector<8x512xf32>
    %c17_i32 = arith.constant 17 : i32
    %1 = tpu.dynamic_rotate %0 by %c17_i32 dim 1 : vector<8x512xf32>, i32 -> vector<8x512xf32>
    %c0_1 = arith.constant 0 : index
    %c0_2 = arith.constant 0 : index
    %2 = vector.load %arg4[%c0_1, %c0_2] : memref<9x512xf32, #tpu.memory_space<vmem>>, vector<1x512xf32>
    %3 = vector.broadcast %2 : vector<1x512xf32> to vector<8x512xf32>
    %4 = arith.mulf %1, %3 : vector<8x512xf32>
    %c16_i32 = arith.constant 16 : i32
    %5 = tpu.dynamic_rotate %0 by %c16_i32 dim 1 : vector<8x512xf32>, i32 -> vector<8x512xf32>
    %c1 = arith.constant 1 : index
    %c0_3 = arith.constant 0 : index
    %6 = vector.load %arg4[%c1, %c0_3] : memref<9x512xf32, #tpu.memory_space<vmem>>, vector<1x512xf32>
    %7 = vector.broadcast %6 : vector<1x512xf32> to vector<8x512xf32>
    %8 = arith.mulf %5, %7 : vector<8x512xf32>
    %c15_i32 = arith.constant 15 : i32
    %9 = tpu.dynamic_rotate %0 by %c15_i32 dim 1 : vector<8x512xf32>, i32 -> vector<8x512xf32>
    %c2 = arith.constant 2 : index
    %c0_4 = arith.constant 0 : index
    %10 = vector.load %arg4[%c2, %c0_4] : memref<9x512xf32, #tpu.memory_space<vmem>>, vector<1x512xf32>
    %11 = vector.broadcast %10 : vector<1x512xf32> to vector<8x512xf32>
    %12 = arith.mulf %9, %11 : vector<8x512xf32>
    %c1_i32 = arith.constant 1 : i32
    %13 = tpu.dynamic_rotate %0 by %c1_i32 dim 1 : vector<8x512xf32>, i32 -> vector<8x512xf32>
    %c3 = arith.constant 3 : index
    %c0_5 = arith.constant 0 : index
    %14 = vector.load %arg4[%c3, %c0_5] : memref<9x512xf32, #tpu.memory_space<vmem>>, vector<1x512xf32>
    %15 = vector.broadcast %14 : vector<1x512xf32> to vector<8x512xf32>
    %16 = arith.mulf %13, %15 : vector<8x512xf32>
    %c511_i32 = arith.constant 511 : i32
    %17 = tpu.dynamic_rotate %0 by %c511_i32 dim 1 : vector<8x512xf32>, i32 -> vector<8x512xf32>
    %c5 = arith.constant 5 : index
    %c0_6 = arith.constant 0 : index
    %18 = vector.load %arg4[%c5, %c0_6] : memref<9x512xf32, #tpu.memory_space<vmem>>, vector<1x512xf32>
    %19 = vector.broadcast %18 : vector<1x512xf32> to vector<8x512xf32>
    %20 = arith.mulf %17, %19 : vector<8x512xf32>
    %c497_i32 = arith.constant 497 : i32
    %21 = tpu.dynamic_rotate %0 by %c497_i32 dim 1 : vector<8x512xf32>, i32 -> vector<8x512xf32>
    %c6 = arith.constant 6 : index
    %c0_7 = arith.constant 0 : index
    %22 = vector.load %arg4[%c6, %c0_7] : memref<9x512xf32, #tpu.memory_space<vmem>>, vector<1x512xf32>
    %23 = vector.broadcast %22 : vector<1x512xf32> to vector<8x512xf32>
    %24 = arith.mulf %21, %23 : vector<8x512xf32>
    %c496_i32 = arith.constant 496 : i32
    %25 = tpu.dynamic_rotate %0 by %c496_i32 dim 1 : vector<8x512xf32>, i32 -> vector<8x512xf32>
    %c7 = arith.constant 7 : index
    %c0_8 = arith.constant 0 : index
    %26 = vector.load %arg4[%c7, %c0_8] : memref<9x512xf32, #tpu.memory_space<vmem>>, vector<1x512xf32>
    %27 = vector.broadcast %26 : vector<1x512xf32> to vector<8x512xf32>
    %28 = arith.mulf %25, %27 : vector<8x512xf32>
    %c495_i32 = arith.constant 495 : i32
    %29 = tpu.dynamic_rotate %0 by %c495_i32 dim 1 : vector<8x512xf32>, i32 -> vector<8x512xf32>
    %c8 = arith.constant 8 : index
    %c0_9 = arith.constant 0 : index
    %30 = vector.load %arg4[%c8, %c0_9] : memref<9x512xf32, #tpu.memory_space<vmem>>, vector<1x512xf32>
    %31 = vector.broadcast %30 : vector<1x512xf32> to vector<8x512xf32>
    %32 = arith.mulf %29, %31 : vector<8x512xf32>
    %33 = tpu.concatenate %4, %8, %12, %16, %0, %20, %24, %28, %32 in 0 : vector<8x512xf32>, vector<8x512xf32>, vector<8x512xf32>, vector<8x512xf32>, vector<8x512xf32>, vector<8x512xf32>, vector<8x512xf32>, vector<8x512xf32>, vector<8x512xf32> -> vector<72x512xf32>
    %c0_10 = arith.constant 0 : index
    %c0_11 = arith.constant 0 : index
    %34 = vector.load %arg2[%c0_10, %c0_11] : memref<8x72xf32, #tpu.memory_space<vmem>>, vector<8x72xf32>
    %cst = arith.constant dense<0.000000e+00> : vector<8x512xf32>
    %35 = tpu.matmul %34, %33, %cst {dimension_numbers = #tpu.dot_dimension_numbers<[1], [0], [0], [1], [0, 0, 1, 1], [], []>} : vector<8x72xf32>, vector<72x512xf32>, vector<8x512xf32> -> vector<8x512xf32>
    %c0_12 = arith.constant 0 : index
    %c0_13 = arith.constant 0 : index
    %36 = vector.load %arg3[%c0_12, %c0_13] : memref<8x1xf32, #tpu.memory_space<vmem>>, vector<8x1xf32>
    %37 = vector.broadcast %36 : vector<8x1xf32> to vector<8x512xf32>
    %38 = arith.addf %35, %37 : vector<8x512xf32>
    %c0_14 = arith.constant 0 : index
    %c0_15 = arith.constant 0 : index
    %39 = vector.load %arg5[%c0_14, %c0_15] : memref<8x512xf32, #tpu.memory_space<vmem>>, vector<8x512xf32>
    tpu.vector_store %arg5[%c0_14, %c0_15], %38 {strides = array<i32>} : memref<8x512xf32, #tpu.memory_space<vmem>>, vector<8x512xf32>,
    return
  }
  func.func @transform_0(%arg0: i32) -> (i32, i32) {
    %c0_i32 = arith.constant 0 : i32
    %c0_i32_0 = arith.constant 0 : i32
    return %c0_i32, %arg0 : i32, i32
  }
  func.func @transform_1(%arg0: i32) -> (i32, i32) {
    %c0_i32 = arith.constant 0 : i32
    %c0_i32_0 = arith.constant 0 : i32
    %c0_i32_1 = arith.constant 0 : i32
    return %c0_i32, %c0_i32_0 : i32, i32
  }
  func.func @transform_2(%arg0: i32) -> (i32, i32) {
    %c0_i32 = arith.constant 0 : i32
    %c0_i32_0 = arith.constant 0 : i32
    %c0_i32_1 = arith.constant 0 : i32
    return %c0_i32, %c0_i32_0 : i32, i32
  }
  func.func @transform_3(%arg0: i32) -> (i32, i32) {
    %c0_i32 = arith.constant 0 : i32
    %c0_i32_0 = arith.constant 0 : i32
    %c0_i32_1 = arith.constant 0 : i32
    return %c0_i32, %c0_i32_0 : i32, i32
  }
  func.func @transform_4(%arg0: i32) -> (i32, i32) {
    %c0_i32 = arith.constant 0 : i32
    %c0_i32_0 = arith.constant 0 : i32
    return %c0_i32, %arg0 : i32, i32
  }
}

</mosaic_0001>

<llo_original>
// kernel: screen_shooting.1
$region0: #{screen_shooting.1}
  #allocation0 [shape = 'u32[]', space=smem, size = 0x4, offset = 0x4, fixed_abs, tag = 'smem constant byte address 0x4 - core index']
  #allocation1 [shape = 'u32[144,128]{1,0:T(1,128)}', space=vmem, size = 0x12000, scoped, tag = 'internal scratch']
  %s0 = inlined_call_operand.vmem [shape: f32[8,512], index: 0, kind: input, shape index: {}]
  %s1 = inlined_call_operand.vmem [shape: f32[8,72], index: 1, kind: input, shape index: {}]
  %s2 = inlined_call_operand.vmem [shape: f32[8,1], index: 2, kind: input, shape index: {}]
  %s3 = inlined_call_operand.vmem [shape: f32[9,512], index: 3, kind: input, shape index: {}]
  %s4 = inlined_call_operand.vmem [shape: f32[8,512], index: 4, kind: output, shape index: {}]
  %s5 = sld [smem:[#allocation0]]
  $region26: #{screen_shooting.1} parent=0
    _
  %s7 = ssub.s32 1, %s5
  %s8 = scalar_select 0, %s7, %s5
  // Predicated region
  $region2: #{screen_shooting.1} parent=0 // pred_check
    _
  $region3: #{screen_shooting.1} parent=0 // pred_check_branch
    %10 = sbr.rel (0) target = $region5
  $region4: #{screen_shooting.1} parent=0 // pred_region
    _
  $region5: #{screen_shooting.1} parent=0 // pred_fallthru
    _
  // Predicated region
  $region6: #{screen_shooting.1} parent=0 // pred_check
    _
  $region7: #{screen_shooting.1} parent=0 // pred_check_branch
    %12 = sbr.rel (0) target = $region9
  $region8: #{screen_shooting.1} parent=0 // pred_region
    _
  $region9: #{screen_shooting.1} parent=0 // pred_fallthru
    _
  // Predicated region
  $region10: #{screen_shooting.1} parent=0 // pred_check
    _
  $region11: #{screen_shooting.1} parent=0 // pred_check_branch
    %14 = sbr.rel (0) target = $region13
  $region12: #{screen_shooting.1} parent=0 // pred_region
    _
  $region13: #{screen_shooting.1} parent=0 // pred_fallthru
    _
  // Predicated region
  $region14: #{screen_shooting.1} parent=0 // pred_check
    _
  $region15: #{screen_shooting.1} parent=0 // pred_check_branch
    %16 = sbr.rel (0) target = $region17
  $region16: #{screen_shooting.1} parent=0 // pred_region
    _
  $region17: #{screen_shooting.1} parent=0 // pred_fallthru
    _
  %v17 = vld [vmem:[%s0] sm:$0xff]
  %v18 = vld [vmem:[%s0 + $0x8] sm:$0xff]
  %v19 = vld [vmem:[%s0 + $0x10] sm:$0xff]
  %v20 = vld [vmem:[%s0 + $0x18] sm:$0xff]
  %21 = vrot.lane.b32.xlu0 %v17, 17
  %v22 = vpop.permute.xlu0 %21
  %23 = vrot.lane.b32.xlu0 %v18, 17
  %v24 = vpop.permute.xlu0 %23
  %25 = vrot.lane.b32.xlu0 %v19, 17
  %v26 = vpop.permute.xlu0 %25
  %27 = vrot.lane.b32.xlu0 %v20, 17
  %v28 = vpop.permute.xlu0 %27
  %v29 = vlaneseq
  %v30 = vand.u32 %v29, 127
  %vm31 = vcmp.lt.s32.totalorder %v30, 17
  %v32 = vsel %vm31, %v26, %v28
  %v33 = vsel %vm31, %v24, %v26
  %v34 = vsel %vm31, %v22, %v24
  %v35 = vsel %vm31, %v28, %v22
  %v36 = vld [vmem:[%s3] ss:$8 sm:$0xf]
  %v38 = vlaneseq
  %v39 = vshrl.u32 %v38, 7
  %v40 = vsub.s32 0, %v39
  %v41 = vrot.slane %v36, %v40
  %v42 = vlaneseq
  %v43 = vshrl.u32 %v42, 7
  %v44 = vsub.s32 1, %v43
  %v45 = vrot.slane %v36, %v44
  %v46 = vlaneseq
  %v47 = vshrl.u32 %v46, 7
  %v48 = vsub.s32 2, %v47
  %v49 = vrot.slane %v36, %v48
  %v50 = vlaneseq
  %v51 = vshrl.u32 %v50, 7
  %v52 = vsub.s32 3, %v51
  %v53 = vrot.slane %v36, %v52
  %v58 = vmul.f32 %v35, %v41
  %v59 = vmul.f32 %v34, %v45
  %v60 = vmul.f32 %v33, %v49
  %v61 = vmul.f32 %v32, %v53
  %62 = vrot.lane.b32.xlu0 %v17, 16
  %v63 = vpop.permute.xlu0 %62
  %64 = vrot.lane.b32.xlu0 %v18, 16
  %v65 = vpop.permute.xlu0 %64
  %66 = vrot.lane.b32.xlu0 %v19, 16
  %v67 = vpop.permute.xlu0 %66
  %68 = vrot.lane.b32.xlu0 %v20, 16
  %v69 = vpop.permute.xlu0 %68
  %vm70 = vcmp.lt.s32.totalorder %v30, 16
  %v71 = vsel %vm70, %v67, %v69
  %v72 = vsel %vm70, %v65, %v67
  %v73 = vsel %vm70, %v63, %v65
  %v74 = vsel %vm70, %v69, %v63
  %s75 = scalar_lea.vmem %s3, 1
  %v76 = vld [vmem:[%s75] ss:$8 sm:$0xf]
  %v78 = vlaneseq
  %v79 = vshrl.u32 %v78, 7
  %v80 = vsub.s32 0, %v79
  %v81 = vrot.slane %v76, %v80
  %v82 = vlaneseq
  %v83 = vshrl.u32 %v82, 7
  %v84 = vsub.s32 1, %v83
  %v85 = vrot.slane %v76, %v84
  %v86 = vlaneseq
  %v87 = vshrl.u32 %v86, 7
  %v88 = vsub.s32 2, %v87
  %v89 = vrot.slane %v76, %v88
  %v90 = vlaneseq
  %v91 = vshrl.u32 %v90, 7
  %v92 = vsub.s32 3, %v91
  %v93 = vrot.slane %v76, %v92
  %v98 = vmul.f32 %v74, %v81
  %v99 = vmul.f32 %v73, %v85
  %v100 = vmul.f32 %v72, %v89
  %v101 = vmul.f32 %v71, %v93
  %102 = vrot.lane.b32.xlu0 %v17, 15
  %v103 = vpop.permute.xlu0 %102
  %104 = vrot.lane.b32.xlu0 %v18, 15
  %v105 = vpop.permute.xlu0 %104
  %106 = vrot.lane.b32.xlu0 %v19, 15
  %v107 = vpop.permute.xlu0 %106
  %108 = vrot.lane.b32.xlu0 %v20, 15
  %v109 = vpop.permute.xlu0 %108
  %vm110 = vcmp.lt.s32.totalorder %v30, 15
  %v111 = vsel %vm110, %v107, %v109
  %v112 = vsel %vm110, %v105, %v107
  %v113 = vsel %vm110, %v103, %v105
  %v114 = vsel %vm110, %v109, %v103
  %s115 = scalar_lea.vmem %s3, 2
  %v116 = vld [vmem:[%s115] ss:$8 sm:$0xf]
  %v118 = vlaneseq
  %v119 = vshrl.u32 %v118, 7
  %v120 = vsub.s32 0, %v119
  %v121 = vrot.slane %v116, %v120
  %v122 = vlaneseq
  %v123 = vshrl.u32 %v122, 7
  %v124 = vsub.s32 1, %v123
  %v125 = vrot.slane %v116, %v124
  %v126 = vlaneseq
  %v127 = vshrl.u32 %v126, 7
  %v128 = vsub.s32 2, %v127
  %v129 = vrot.slane %v116, %v128
  %v130 = vlaneseq
  %v131 = vshrl.u32 %v130, 7
  %v132 = vsub.s32 3, %v131
  %v133 = vrot.slane %v116, %v132
  %v138 = vmul.f32 %v114, %v121
  %v139 = vmul.f32 %v113, %v125
  %v140 = vmul.f32 %v112, %v129
  %v141 = vmul.f32 %v111, %v133
  %142 = vrot.lane.b32.xlu0 %v17, 1
  %v143 = vpop.permute.xlu0 %142
  %144 = vrot.lane.b32.xlu0 %v18, 1
  %v145 = vpop.permute.xlu0 %144
  %146 = vrot.lane.b32.xlu0 %v19, 1
  %v147 = vpop.permute.xlu0 %146
  %148 = vrot.lane.b32.xlu0 %v20, 1
  %v149 = vpop.permute.xlu0 %148
  %vm150 = vcmp.lt.s32.totalorder %v30, 1
  %v151 = vsel %vm150, %v147, %v149
  %v152 = vsel %vm150, %v145, %v147
  %v153 = vsel %vm150, %v143, %v145
  %v154 = vsel %vm150, %v149, %v143
  %s155 = scalar_lea.vmem %s3, 3
  %v156 = vld [vmem:[%s155] ss:$8 sm:$0xf]
  %v158 = vlaneseq
  %v159 = vshrl.u32 %v158, 7
  %v160 = vsub.s32 0, %v159
  %v161 = vrot.slane %v156, %v160
  %v162 = vlaneseq
  %v163 = vshrl.u32 %v162, 7
  %v164 = vsub.s32 1, %v163
  %v165 = vrot.slane %v156, %v164
  %v166 = vlaneseq
  %v167 = vshrl.u32 %v166, 7
  %v168 = vsub.s32 2, %v167
  %v169 = vrot.slane %v156, %v168
  %v170 = vlaneseq
  %v171 = vshrl.u32 %v170, 7
  %v172 = vsub.s32 3, %v171
  %v173 = vrot.slane %v156, %v172
  %v178 = vmul.f32 %v154, %v161
  %v179 = vmul.f32 %v153, %v165
  %v180 = vmul.f32 %v152, %v169
  %v181 = vmul.f32 %v151, %v173
  %182 = vrot.lane.b32.xlu0 %v17, 127
  %v183 = vpop.permute.xlu0 %182
  %184 = vrot.lane.b32.xlu0 %v18, 127
  %v185 = vpop.permute.xlu0 %184
  %186 = vrot.lane.b32.xlu0 %v19, 127
  %v187 = vpop.permute.xlu0 %186
  %188 = vrot.lane.b32.xlu0 %v20, 127
  %v189 = vpop.permute.xlu0 %188
  %vm190 = vcmp.lt.s32.totalorder %v30, 127
  %v191 = vsel %vm190, %v187, %v189
  %v192 = vsel %vm190, %v185, %v187
  %v193 = vsel %vm190, %v183, %v185
  %v194 = vsel %vm190, %v189, %v183
  %s195 = scalar_lea.vmem %s3, 5
  %v196 = vld [vmem:[%s195] ss:$8 sm:$0xf]
  %v198 = vlaneseq
  %v199 = vshrl.u32 %v198, 7
  %v200 = vsub.s32 0, %v199
  %v201 = vrot.slane %v196, %v200
  %v202 = vlaneseq
  %v203 = vshrl.u32 %v202, 7
  %v204 = vsub.s32 1, %v203
  %v205 = vrot.slane %v196, %v204
  %v206 = vlaneseq
  %v207 = vshrl.u32 %v206, 7
  %v208 = vsub.s32 2, %v207
  %v209 = vrot.slane %v196, %v208
  %v210 = vlaneseq
  %v211 = vshrl.u32 %v210, 7
  %v212 = vsub.s32 3, %v211
  %v213 = vrot.slane %v196, %v212
  %v218 = vmul.f32 %v193, %v201
  %v219 = vmul.f32 %v192, %v205
  %v220 = vmul.f32 %v191, %v209
  %v221 = vmul.f32 %v194, %v213
  %222 = vrot.lane.b32.xlu0 %v17, 113
  %v223 = vpop.permute.xlu0 %222
  %224 = vrot.lane.b32.xlu0 %v18, 113
  %v225 = vpop.permute.xlu0 %224
  %226 = vrot.lane.b32.xlu0 %v19, 113
  %v227 = vpop.permute.xlu0 %226
  %228 = vrot.lane.b32.xlu0 %v20, 113
  %v229 = vpop.permute.xlu0 %228
  %vm230 = vcmp.lt.s32.totalorder %v30, 113
  %v231 = vsel %vm230, %v227, %v229
  %v232 = vsel %vm230, %v225, %v227
  %v233 = vsel %vm230, %v223, %v225
  %v234 = vsel %vm230, %v229, %v223
  %s235 = scalar_lea.vmem %s3, 6
  %v236 = vld [vmem:[%s235] ss:$8 sm:$0xf]
  %v238 = vlaneseq
  %v239 = vshrl.u32 %v238, 7
  %v240 = vsub.s32 0, %v239
  %v241 = vrot.slane %v236, %v240
  %v242 = vlaneseq
  %v243 = vshrl.u32 %v242, 7
  %v244 = vsub.s32 1, %v243
  %v245 = vrot.slane %v236, %v244
  %v246 = vlaneseq
  %v247 = vshrl.u32 %v246, 7
  %v248 = vsub.s32 2, %v247
  %v249 = vrot.slane %v236, %v248
  %v250 = vlaneseq
  %v251 = vshrl.u32 %v250, 7
  %v252 = vsub.s32 3, %v251
  %v253 = vrot.slane %v236, %v252
  %v258 = vmul.f32 %v233, %v241
  %v259 = vmul.f32 %v232, %v245
  %v260 = vmul.f32 %v231, %v249
  %v261 = vmul.f32 %v234, %v253
  %262 = vrot.lane.b32.xlu0 %v17, 112
  %v263 = vpop.permute.xlu0 %262
  %264 = vrot.lane.b32.xlu0 %v18, 112
  %v265 = vpop.permute.xlu0 %264
  %266 = vrot.lane.b32.xlu0 %v19, 112
  %v267 = vpop.permute.xlu0 %266
  %268 = vrot.lane.b32.xlu0 %v20, 112
  %v269 = vpop.permute.xlu0 %268
  %vm270 = vcmp.lt.s32.totalorder %v30, 112
  %v271 = vsel %vm270, %v267, %v269
  %v272 = vsel %vm270, %v265, %v267
  %v273 = vsel %vm270, %v263, %v265
  %v274 = vsel %vm270, %v269, %v263
  %s275 = scalar_lea.vmem %s3, 7
  %v276 = vld [vmem:[%s275] ss:$8 sm:$0xf]
  %v278 = vlaneseq
  %v279 = vshrl.u32 %v278, 7
  %v280 = vsub.s32 0, %v279
  %v281 = vrot.slane %v276, %v280
  %v282 = vlaneseq
  %v283 = vshrl.u32 %v282, 7
  %v284 = vsub.s32 1, %v283
  %v285 = vrot.slane %v276, %v284
  %v286 = vlaneseq
  %v287 = vshrl.u32 %v286, 7
  %v288 = vsub.s32 2, %v287
  %v289 = vrot.slane %v276, %v288
  %v290 = vlaneseq
  %v291 = vshrl.u32 %v290, 7
  %v292 = vsub.s32 3, %v291
  %v293 = vrot.slane %v276, %v292
  %v298 = vmul.f32 %v273, %v281
  %v299 = vmul.f32 %v272, %v285
  %v300 = vmul.f32 %v271, %v289
  %v301 = vmul.f32 %v274, %v293
  %302 = vrot.lane.b32.xlu0 %v17, 111
  %v303 = vpop.permute.xlu0 %302
  %304 = vrot.lane.b32.xlu0 %v18, 111
  %v305 = vpop.permute.xlu0 %304
  %306 = vrot.lane.b32.xlu0 %v19, 111
  %v307 = vpop.permute.xlu0 %306
  %308 = vrot.lane.b32.xlu0 %v20, 111
  %v309 = vpop.permute.xlu0 %308
  %vm310 = vcmp.lt.s32.totalorder %v30, 111
  %v311 = vsel %vm310, %v307, %v309
  %v312 = vsel %vm310, %v305, %v307
  %v313 = vsel %vm310, %v303, %v305
  %v314 = vsel %vm310, %v309, %v303
  %s315 = scalar_lea.vmem %s3, 32
  %v316 = vld [vmem:[%s315] ss:$8 sm:$0xf]
  %v318 = vlaneseq
  %v319 = vshrl.u32 %v318, 7
  %v320 = vsub.s32 0, %v319
  %v321 = vrot.slane %v316, %v320
  %v322 = vlaneseq
  %v323 = vshrl.u32 %v322, 7
  %v324 = vsub.s32 1, %v323
  %v325 = vrot.slane %v316, %v324
  %v326 = vlaneseq
  %v327 = vshrl.u32 %v326, 7
  %v328 = vsub.s32 2, %v327
  %v329 = vrot.slane %v316, %v328
  %v330 = vlaneseq
  %v331 = vshrl.u32 %v330, 7
  %v332 = vsub.s32 3, %v331
  %v333 = vrot.slane %v316, %v332
  %v338 = vmul.f32 %v313, %v321
  %v339 = vmul.f32 %v312, %v325
  %v340 = vmul.f32 %v311, %v329
  %v341 = vmul.f32 %v314, %v333
  %v342 = vld [vmem:[%s1] sm:$0xff]
  %v343 = vld [vmem:[%s2] sm:$0xff]
  %345 = vset.pattern.permute.xlu0 0
  %346 = vperm.xlu0 %345, %v343
  %v347 = vpop.permute.xlu0 %346
  %vm349 = vcmask 588800
  %v351 = vsel %vm349, %v342, 0
  %353 = vmatprep.subr.mxu0 0.0
  %354 = vmatpush1.msra.mxu0 0.0
  %355 = vmatprep.subr.mxu0 0.0
  %356 = vmatpush1.msra.mxu0 0.0
  %357 = vmatprep.subr.mxu0 0.0
  %358 = vmatpush1.msra.mxu0 0.0
  %359 = vmatprep.subr.mxu0 0.0
  %360 = vmatpush1.msra.mxu0 0.0
  %361 = vmatprep.subr.mxu0 0.0
  %362 = vmatpush1.msra.mxu0 0.0
  %363 = vmatprep.subr.mxu0 0.0
  %364 = vmatpush1.msra.mxu0 0.0
  %365 = vmatprep.subr.mxu0 0.0
  %366 = vmatpush1.msra.mxu0 0.0
  %367 = vmatprep.subr.mxu0 %v339
  %368 = vmatpush1.msra.mxu0 %v338
  %369 = vmatprep.subr.mxu0 %v299
  %370 = vmatpush1.msra.mxu0 %v298
  %371 = vmatprep.subr.mxu0 %v259
  %372 = vmatpush1.msra.mxu0 %v258
  %373 = vmatprep.subr.mxu0 %v219
  %374 = vmatpush1.msra.mxu0 %v218
  %375 = vmatprep.subr.mxu0 %v18
  %376 = vmatpush1.msra.mxu0 %v17
  %377 = vmatprep.subr.mxu0 %v179
  %378 = vmatpush1.msra.mxu0 %v178
  %379 = vmatprep.subr.mxu0 %v139
  %380 = vmatpush1.msra.mxu0 %v138
  %381 = vmatprep.subr.mxu0 %v99
  %382 = vmatpush1.msra.mxu0 %v98
  %383 = vmatprep.subr.mxu0 %v59
  %384 = vmatpush1.msra.mxu0 %v58
  %385 = vmatprep.subr.mxu0 0.0
  %386 = vmatpush2.msra.mxu0 0.0
  %387 = vmatprep.subr.mxu0 0.0
  %388 = vmatpush2.msra.mxu0 0.0
  %389 = vmatprep.subr.mxu0 0.0
  %390 = vmatpush2.msra.mxu0 0.0
  %391 = vmatprep.subr.mxu0 0.0
  %392 = vmatpush2.msra.mxu0 0.0
  %393 = vmatprep.subr.mxu0 0.0
  %394 = vmatpush2.msra.mxu0 0.0
  %395 = vmatprep.subr.mxu0 0.0
  %396 = vmatpush2.msra.mxu0 0.0
  %397 = vmatprep.subr.mxu0 0.0
  %398 = vmatpush2.msra.mxu0 0.0
  %399 = vmatprep.subr.mxu0 0.0
  %400 = vmatpush2.msra.mxu0 0.0
  %401 = vmatprep.subr.mxu0 0.0
  %402 = vmatpush2.msra.mxu0 0.0
  %403 = vmatprep.subr.mxu0 0.0
  %404 = vmatpush2.msra.mxu0 0.0
  %405 = vmatprep.subr.mxu0 0.0
  %406 = vmatpush2.msra.mxu0 0.0
  %407 = vmatprep.subr.mxu0 0.0
  %408 = vmatpush2.msra.mxu0 0.0
  %409 = vmatprep.subr.mxu0 0.0
  %410 = vmatpush2.msra.mxu0 0.0
  %411 = vmatprep.subr.mxu0 0.0
  %412 = vmatpush2.msra.mxu0 0.0
  %413 = vmatprep.subr.mxu0 0.0
  %414 = vmatpush2.msra.mxu0 0.0
  %415 = vmatprep.subr.mxu0 0.0
  %416 = vmatpush2.msra.mxu0 0.0
  %417 = vmatprep.mubr.f32.mxu0 0.0
  %418 = vmatmul.mubr.f32.gmra.mxu0 %v351
  %v419 = vpop.f32.mrf.mxu0
  %v420 = vadd.f32 %v347, %v419
  %v421 = vpop.f32.mrf.mxu0
  %v422 = vadd.f32 %v347, %v421
  %423 = vdwg.mxu0
  %424 = vmatprep.subr.mxu0 0.0
  %425 = vmatpush1.msra.mxu0 0.0
  %426 = vmatprep.subr.mxu0 0.0
  %427 = vmatpush1.msra.mxu0 0.0
  %428 = vmatprep.subr.mxu0 0.0
  %429 = vmatpush1.msra.mxu0 0.0
  %430 = vmatprep.subr.mxu0 0.0
  %431 = vmatpush1.msra.mxu0 0.0
  %432 = vmatprep.subr.mxu0 0.0
  %433 = vmatpush1.msra.mxu0 0.0
  %434 = vmatprep.subr.mxu0 0.0
  %435 = vmatpush1.msra.mxu0 0.0
  %436 = vmatprep.subr.mxu0 0.0
  %437 = vmatpush1.msra.mxu0 0.0
  %438 = vmatprep.subr.mxu0 %v341
  %439 = vmatpush1.msra.mxu0 %v340
  %440 = vmatprep.subr.mxu0 %v301
  %441 = vmatpush1.msra.mxu0 %v300
  %442 = vmatprep.subr.mxu0 %v261
  %443 = vmatpush1.msra.mxu0 %v260
  %444 = vmatprep.subr.mxu0 %v221
  %445 = vmatpush1.msra.mxu0 %v220
  %446 = vmatprep.subr.mxu0 %v20
  %447 = vmatpush1.msra.mxu0 %v19
  %448 = vmatprep.subr.mxu0 %v181
  %449 = vmatpush1.msra.mxu0 %v180
  %450 = vmatprep.subr.mxu0 %v141
  %451 = vmatpush1.msra.mxu0 %v140
  %452 = vmatprep.subr.mxu0 %v101
  %453 = vmatpush1.msra.mxu0 %v100
  %454 = vmatprep.subr.mxu0 %v61
  %455 = vmatpush1.msra.mxu0 %v60
  %456 = vmatprep.subr.mxu0 0.0
  %457 = vmatpush2.msra.mxu0 0.0
  %458 = vmatprep.subr.mxu0 0.0
  %459 = vmatpush2.msra.mxu0 0.0
  %460 = vmatprep.subr.mxu0 0.0
  %461 = vmatpush2.msra.mxu0 0.0
  %462 = vmatprep.subr.mxu0 0.0
  %463 = vmatpush2.msra.mxu0 0.0
  %464 = vmatprep.subr.mxu0 0.0
  %465 = vmatpush2.msra.mxu0 0.0
  %466 = vmatprep.subr.mxu0 0.0
  %467 = vmatpush2.msra.mxu0 0.0
  %468 = vmatprep.subr.mxu0 0.0
  %469 = vmatpush2.msra.mxu0 0.0
  %470 = vmatprep.subr.mxu0 0.0
  %471 = vmatpush2.msra.mxu0 0.0
  %472 = vmatprep.subr.mxu0 0.0
  %473 = vmatpush2.msra.mxu0 0.0
  %474 = vmatprep.subr.mxu0 0.0
  %475 = vmatpush2.msra.mxu0 0.0
  %476 = vmatprep.subr.mxu0 0.0
  %477 = vmatpush2.msra.mxu0 0.0
  %478 = vmatprep.subr.mxu0 0.0
  %479 = vmatpush2.msra.mxu0 0.0
  %480 = vmatprep.subr.mxu0 0.0
  %481 = vmatpush2.msra.mxu0 0.0
  %482 = vmatprep.subr.mxu0 0.0
  %483 = vmatpush2.msra.mxu0 0.0
  %484 = vmatprep.subr.mxu0 0.0
  %485 = vmatpush2.msra.mxu0 0.0
  %486 = vmatprep.subr.mxu0 0.0
  %487 = vmatpush2.msra.mxu0 0.0
  %488 = vmatprep.mubr.f32.mxu0 0.0
  %489 = vmatmul.mubr.f32.gmra.mxu0 %v351
  %v490 = vpop.f32.mrf.mxu0
  %v491 = vadd.f32 %v347, %v490
  %v492 = vpop.f32.mrf.mxu0
  %v493 = vadd.f32 %v347, %v492
  %494 = vdwg.mxu0
  %495 = vst [vmem:[%s4] sm:$0xff] %v420
  %496 = vst [vmem:[%s4 + $0x8] sm:$0xff] %v422
  %497 = vst [vmem:[%s4 + $0x10] sm:$0xff] %v491
  %498 = vst [vmem:[%s4 + $0x18] sm:$0xff] %v493
  // Predicated region
  $region18: #{screen_shooting.1} parent=0 // pred_check
    _
  $region19: #{screen_shooting.1} parent=0 // pred_check_branch
    %500 = sbr.rel (0) target = $region21
  $region20: #{screen_shooting.1} parent=0 // pred_region
    _
  $region21: #{screen_shooting.1} parent=0 // pred_fallthru
    _
  // Predicated region
  $region22: #{screen_shooting.1} parent=0 // pred_check
    _
  $region23: #{screen_shooting.1} parent=0 // pred_check_branch
    %502 = sbr.rel (0) target = $region25
  $region24: #{screen_shooting.1} parent=0 // pred_region
    _
  $region25: #{screen_shooting.1} parent=0 // pred_fallthru
    _

</llo_original>
